<compile_context>
chip_gen: v6e
topology: v6e:2x2x1
jax: 0.10.0
libtpu: 0.0.40
codegen_flags: <defaults>
</compile_context>

<pallas_src>
import jax
import jax.numpy as jnp
from jax.experimental import pallas as pl
from jax.experimental.pallas import tpu as pltpu


def attention_pooling_kernel(x_ref, w_ref, b_ref, expand_ref, reduce_ref, o_ref):
    # x_ref:      (TB, N*D)   streamed batch tile (flattened, lane-dense)
    # w_ref:      (N*D, N)    resident projection weight
    # b_ref:      (1, N)      resident projection bias
    # expand_ref: (N, N*D)    resident 0/1 selector: kron(I_N, ones(1, D))
    # reduce_ref: (N*D, D)    resident 0/1 selector: kron(ones(N, 1), I_D)
    # o_ref:      (TB, D)
    x = x_ref[...]                                      # single VMEM read of the tile

    # ---- energy = x_flat @ W + b  (one K=N*D MXU matmul, f32 accumulate) --
    energy = jnp.dot(x, w_ref[...], preferred_element_type=jnp.float32)
    energy = energy + b_ref[...].astype(jnp.float32)    # (TB, N)

    # ---- numerically-stable softmax over emb_num (strictly row-wise, so
    # garbage rows of a partial batch tile never contaminate valid rows) ----
    m = jnp.max(energy, axis=1, keepdims=True)
    e = jnp.exp(energy - m)
    s = jnp.sum(e, axis=1, keepdims=True)
    r = pl.reciprocal(s, approx=True)                   # EUP slot (free-ish)
    r = r * (2.0 - s * r)                               # one Newton step -> ~f32 exact
    weights = e * r                                     # (TB, N) f32

    # ---- lane-dense pooling --------------------------------------------
    # weights (TB, N) -> (TB, N*D) via constant selector matmul (MXU slack),
    # elementwise multiply with x_flat on the VPU, group-sum the N lane
    # groups back to (TB, D) with the second constant selector matmul.
    w_exp = jnp.dot(weights, expand_ref[...],
                    preferred_element_type=jnp.float32)           # (TB, N*D)
    weighted = w_exp * x.astype(jnp.float32)                      # (TB, N*D)
    out = jnp.dot(weighted, reduce_ref[...],
                  preferred_element_type=jnp.float32)             # (TB, D)
    o_ref[...] = out.astype(o_ref.dtype)


def attention_pooling(x, w, b, *, block_b=None):
    """x: (B, emb_num, emb_dim)
    w: (emb_num*emb_dim, emb_num)  -- transpose of the PyTorch nn.Linear weight
    b: (emb_num,)"""
    B, N, D = x.shape
    ND = N * D
    assert w.shape == (ND, N), (
        f"expected projection weight of shape {(ND, N)} (transpose of the "
        f"torch nn.Linear weight), got {w.shape}")
    assert b.shape == (N,), b.shape

    # Host-side, one-time layout work (row-major flatten == torch .view):
    x_flat = x.reshape(B, ND)
    b2 = b.reshape(1, N)
    # Constant 0/1 selectors for lane-dense pooling (tiny, VMEM-resident).
    expand = jnp.kron(jnp.eye(N, dtype=jnp.float32),
                      jnp.ones((1, D), dtype=jnp.float32))        # (N, N*D)
    reduce = jnp.kron(jnp.ones((N, 1), dtype=jnp.float32),
                      jnp.eye(D, dtype=jnp.float32))              # (N*D, D)

    # ---- batch tile size --------------------------------------------------
    # Target ~4 MiB of x per buffer (well inside the 85%+ HBM-roofline regime,
    # ~12-14 MiB total double-buffered footprint -> fits v5e/v6e/v7x), clamp
    # so the batch grid has >= 2 steps when B allows it (v7x megacore), and
    # keep the tile sublane-aligned (multiple of 8) or equal to B.
    if block_b is None:
        row_bytes = ND * x.dtype.itemsize
        block_b = max(1, (4 << 20) // max(row_bytes, 1))          # ~4 MiB / buffer
        if B > 8:
            block_b = min(block_b, pl.cdiv(B, 2))                 # >= 2 grid steps
            block_b = max(8, (block_b // 8) * 8)                  # sublane multiple
        block_b = min(block_b, B)                                 # B <= 8 -> full dim
    grid = (pl.cdiv(B, block_b),)

    cost = pl.CostEstimate(
        flops=2 * B * ND * N          # energy matmul
              + 2 * B * N * ND        # weight expansion selector matmul
              + B * ND                # elementwise multiply
              + 2 * B * ND * D,       # group-sum selector matmul
        transcendentals=B * N,        # exp
        bytes_accessed=(x_flat.size * x_flat.dtype.itemsize
                        + w.size * w.dtype.itemsize
                        + b2.size * b2.dtype.itemsize
                        + expand.size * 4 + reduce.size * 4
                        + B * D * x.dtype.itemsize),
    )

    return pl.pallas_call(
        attention_pooling_kernel,
        out_shape=jax.ShapeDtypeStruct((B, D), x.dtype),
        grid=grid,
        in_specs=[
            pl.BlockSpec((block_b, ND), lambda i: (i, 0)),        # streamed x
            pl.BlockSpec((ND, N), lambda i: (0, 0)),              # resident W
            pl.BlockSpec((1, N), lambda i: (0, 0)),               # resident b
            pl.BlockSpec((N, ND), lambda i: (0, 0)),              # resident expand
            pl.BlockSpec((ND, D), lambda i: (0, 0)),              # resident reduce
        ],
        out_specs=pl.BlockSpec((block_b, D), lambda i: (i, 0)),
        compiler_params=pltpu.CompilerParams(
            dimension_semantics=("parallel",),
            vmem_limit_bytes=32 << 20),
        cost_estimate=cost,
    )(x_flat, w, b2, expand, reduce)


def attention_pooling_ref(x, w, b):
    """Pure-JAX reference matching the PyTorch forward exactly."""
    B = x.shape[0]
    energy = x.reshape(B, -1) @ w + b
    weights = jax.nn.softmax(energy, axis=1)
    return jnp.sum(x * weights[:, :, None], axis=1)


def _run_case(key, B, emb_num, emb_dim):
    kx, kw, kb = jax.random.split(key, 3)
    x = jax.random.normal(kx, (B, emb_num, emb_dim), dtype=jnp.float32)
    fan_in = emb_num * emb_dim
    bound = 1.0 / (fan_in ** 0.5)
    w = jax.random.uniform(kw, (fan_in, emb_num), jnp.float32, -bound, bound)
    b = jax.random.uniform(kb, (emb_num,), jnp.float32, -bound, bound)

    out = jax.block_until_ready(attention_pooling(x, w, b))
    ref = attention_pooling_ref(x, w, b)
    assert out.shape == (B, emb_dim), out.shape
    err = float(jnp.max(jnp.abs(out - ref)))
    assert jnp.allclose(out, ref, atol=1e-4, rtol=1e-4), err


if __name__ == "__main__":
    key = jax.random.PRNGKey(0)
    k1, k2, k3 = jax.random.split(key, 3)

    # Small shapes consistent with the module: emb_num sequences of emb_dim.
    _run_case(k1, B=2, emb_num=8, emb_dim=32)
    # Non-multiple-of-8 batch: exercises batch tiling + a partial last tile.
    _run_case(k2, B=20, emb_num=8, emb_dim=32)
    # Larger batch: exercises the big-tile path (block_b>8, grid>=2) cheaply.
    _run_case(k3, B=4100, emb_num=8, emb_dim=32)

    print("KERNEL_OK")
</pallas_src>

<mosaic_0001>
module attributes {stable_mosaic.version = 11 : i64} {
  func.func @attention_pooling_kernel(%arg0: i32, %arg1: memref<2x256xf32, #tpu.memory_space<vmem>>, %arg2: memref<256x8xf32, #tpu.memory_space<vmem>>, %arg3: memref<1x8xf32, #tpu.memory_space<vmem>>, %arg4: memref<8x256xf32, #tpu.memory_space<vmem>>, %arg5: memref<256x32xf32, #tpu.memory_space<vmem>>, %arg6: memref<2x32xf32, #tpu.memory_space<vmem>>) attributes {dimension_semantics = [#tpu.dimension_semantics<parallel>], iteration_bounds = array<i64: 1>, scalar_prefetch = 0 : i64, scratch_operands = 0 : i64, tpu.core_type = #tpu.core_type<tc>, window_params = [{transform_indices = @transform_0, window_bounds = array<i64: 2, 256>}, {pipeline_mode = #tpu.pipeline_mode<synchronous>, transform_indices = @transform_1, window_bounds = array<i64: 256, 8>}, {pipeline_mode = #tpu.pipeline_mode<synchronous>, transform_indices = @transform_2, window_bounds = array<i64: 1, 8>}, {pipeline_mode = #tpu.pipeline_mode<synchronous>, transform_indices = @transform_3, window_bounds = array<i64: 8, 256>}, {pipeline_mode = #tpu.pipeline_mode<synchronous>, transform_indices = @transform_4, window_bounds = array<i64: 256, 32>}, {transform_indices = @transform_5, window_bounds = array<i64: 2, 32>}]} {
    %c0 = arith.constant 0 : index
    %c0_0 = arith.constant 0 : index
    %0 = vector.load %arg1[%c0, %c0_0] : memref<2x256xf32, #tpu.memory_space<vmem>>, vector<2x256xf32>
    %c0_1 = arith.constant 0 : index
    %c0_2 = arith.constant 0 : index
    %1 = vector.load %arg2[%c0_1, %c0_2] : memref<256x8xf32, #tpu.memory_space<vmem>>, vector<256x8xf32>
    %cst = arith.constant dense<0.000000e+00> : vector<2x8xf32>
    %2 = tpu.matmul %0, %1, %cst {dimension_numbers = #tpu.dot_dimension_numbers<[1], [0], [0], [1], [0, 0, 1, 1], [], []>} : vector<2x256xf32>, vector<256x8xf32>, vector<2x8xf32> -> vector<2x8xf32>
    %c0_3 = arith.constant 0 : index
    %c0_4 = arith.constant 0 : index
    %3 = vector.load %arg3[%c0_3, %c0_4] : memref<1x8xf32, #tpu.memory_space<vmem>>, vector<1x8xf32>
    %4 = vector.broadcast %3 : vector<1x8xf32> to vector<2x8xf32>
    %5 = arith.addf %2, %4 : vector<2x8xf32>
    %cst_5 = arith.constant dense<0xFF800000> : vector<2xf32>
    %6 = vector.multi_reduction <maximumf>, %5, %cst_5 [1] : vector<2x8xf32> to vector<2xf32>
    %7 = vector.shape_cast %6 : vector<2xf32> to vector<2x1xf32>
    %8 = vector.broadcast %7 : vector<2x1xf32> to vector<2x8xf32>
    %9 = arith.subf %5, %8 : vector<2x8xf32>
    %10 = math.exp %9 : vector<2x8xf32>
    %cst_6 = arith.constant dense<0.000000e+00> : vector<2xf32>
    %11 = vector.multi_reduction <add>, %10, %cst_6 [1] : vector<2x8xf32> to vector<2xf32>
    %12 = vector.shape_cast %11 : vector<2xf32> to vector<2x1xf32>
    %13 = tpu.reciprocal %12 {approx = true} : vector<2x1xf32> -> vector<2x1xf32>
    %14 = arith.mulf %12, %13 : vector<2x1xf32>
    %cst_7 = arith.constant 2.000000e+00 : f32
    %15 = vector.broadcast %cst_7 : f32 to vector<2x1xf32>
    %16 = arith.subf %15, %14 : vector<2x1xf32>
    %17 = arith.mulf %13, %16 : vector<2x1xf32>
    %18 = vector.broadcast %17 : vector<2x1xf32> to vector<2x8xf32>
    %19 = arith.mulf %10, %18 : vector<2x8xf32>
    %c0_8 = arith.constant 0 : index
    %c0_9 = arith.constant 0 : index
    %20 = vector.load %arg4[%c0_8, %c0_9] : memref<8x256xf32, #tpu.memory_space<vmem>>, vector<8x256xf32>
    %cst_10 = arith.constant dense<0.000000e+00> : vector<2x256xf32>
    %21 = tpu.matmul %19, %20, %cst_10 {dimension_numbers = #tpu.dot_dimension_numbers<[1], [0], [0], [1], [0, 0, 1, 1], [], []>} : vector<2x8xf32>, vector<8x256xf32>, vector<2x256xf32> -> vector<2x256xf32>
    %22 = arith.mulf %21, %0 : vector<2x256xf32>
    %c0_11 = arith.constant 0 : index
    %c0_12 = arith.constant 0 : index
    %23 = vector.load %arg5[%c0_11, %c0_12] : memref<256x32xf32, #tpu.memory_space<vmem>>, vector<256x32xf32>
    %cst_13 = arith.constant dense<0.000000e+00> : vector<2x32xf32>
    %24 = tpu.matmul %22, %23, %cst_13 {dimension_numbers = #tpu.dot_dimension_numbers<[1], [0], [0], [1], [0, 0, 1, 1], [], []>} : vector<2x256xf32>, vector<256x32xf32>, vector<2x32xf32> -> vector<2x32xf32>
    %c0_14 = arith.constant 0 : index
    %c0_15 = arith.constant 0 : index
    %25 = vector.load %arg6[%c0_14, %c0_15] : memref<2x32xf32, #tpu.memory_space<vmem>>, vector<2x32xf32>
    tpu.vector_store %arg6[%c0_14, %c0_15], %24 {strides = array<i32>} : memref<2x32xf32, #tpu.memory_space<vmem>>, vector<2x32xf32>,
    return
  }
  func.func @transform_0(%arg0: i32) -> (i32, i32) {
    %c0_i32 = arith.constant 0 : i32
    %c0_i32_0 = arith.constant 0 : i32
    return %arg0, %c0_i32 : i32, i32
  }
  func.func @transform_1(%arg0: i32) -> (i32, i32) {
    %c0_i32 = arith.constant 0 : i32
    %c0_i32_0 = arith.constant 0 : i32
    %c0_i32_1 = arith.constant 0 : i32
    return %c0_i32, %c0_i32_0 : i32, i32
  }
  func.func @transform_2(%arg0: i32) -> (i32, i32) {
    %c0_i32 = arith.constant 0 : i32
    %c0_i32_0 = arith.constant 0 : i32
    %c0_i32_1 = arith.constant 0 : i32
    return %c0_i32, %c0_i32_0 : i32, i32
  }
  func.func @transform_3(%arg0: i32) -> (i32, i32) {
    %c0_i32 = arith.constant 0 : i32
    %c0_i32_0 = arith.constant 0 : i32
    %c0_i32_1 = arith.constant 0 : i32
    return %c0_i32, %c0_i32_0 : i32, i32
  }
  func.func @transform_4(%arg0: i32) -> (i32, i32) {
    %c0_i32 = arith.constant 0 : i32
    %c0_i32_0 = arith.constant 0 : i32
    %c0_i32_1 = arith.constant 0 : i32
    return %c0_i32, %c0_i32_0 : i32, i32
  }
  func.func @transform_5(%arg0: i32) -> (i32, i32) {
    %c0_i32 = arith.constant 0 : i32
    %c0_i32_0 = arith.constant 0 : i32
    return %arg0, %c0_i32 : i32, i32
  }
}

</mosaic_0001>

<llo_original>
// kernel: tpu_custom_call.1
$region0: #{tpu_custom_call.1}
  #allocation0 [shape = 'u32[]', space=smem, size = 0x4, offset = 0x4, fixed_abs, tag = 'smem constant byte address 0x4 - core index']
  #allocation1 [shape = 'u32[144,128]{1,0:T(1,128)}', space=vmem, size = 0x12000, scoped, tag = 'internal scratch']
  %s0 = inlined_call_operand.vmem [shape: f32[2,256], index: 0, kind: input, shape index: {}]
  %s1 = inlined_call_operand.vmem [shape: f32[256,8], index: 1, kind: input, shape index: {}]
  %s2 = inlined_call_operand.vmem [shape: f32[1,8], index: 2, kind: input, shape index: {}]
  %s3 = inlined_call_operand.vmem [shape: f32[8,256], index: 3, kind: input, shape index: {}]
  %s4 = inlined_call_operand.vmem [shape: f32[256,32], index: 4, kind: input, shape index: {}]
  %s5 = inlined_call_operand.hbm [shape: f32[2,32], index: 5, kind: output, shape index: {}]
  %s6 = sld [smem:[#allocation0]]
  $region30: #{tpu_custom_call.1} parent=0
    _
  %s8 = ssub.s32 1, %s6
  %s9 = scalar_select 0, %s8, %s6
  $region1: #{tpu_custom_call.1} parent=0
    #allocation2 [shape = 'u8[1024]{0}', space=vmem, size = 0x400, scoped, tag = 'output window, operand 0, single buffered']
    #allocation3 [shape = 's32[1]{0}', space=sflag, size = 0x4, scoped, tag = 'scoped memory for tpu_custom_call.1']
    %10 = vsyncpa [#allocation3], 0
    // Predicated region
    $region2: #{tpu_custom_call.1} parent=1 // pred_check
      _
    $region3: #{tpu_custom_call.1} parent=1 // pred_check_branch
      %12 = sbr.rel (0) target = $region5
    $region4: #{tpu_custom_call.1} parent=1 // pred_region
      _
    $region5: #{tpu_custom_call.1} parent=1 // pred_fallthru
      _
    // Predicated region
    $region6: #{tpu_custom_call.1} parent=1 // pred_check
      _
    $region7: #{tpu_custom_call.1} parent=1 // pred_check_branch
      %14 = sbr.rel (0) target = $region9
    $region8: #{tpu_custom_call.1} parent=1 // pred_region
      _
    $region9: #{tpu_custom_call.1} parent=1 // pred_fallthru
      _
    // Predicated region
    $region10: #{tpu_custom_call.1} parent=1 // pred_check
      _
    $region11: #{tpu_custom_call.1} parent=1 // pred_check_branch
      %16 = sbr.rel (0) target = $region13
    $region12: #{tpu_custom_call.1} parent=1 // pred_region
      _
    $region13: #{tpu_custom_call.1} parent=1 // pred_fallthru
      _
    // Predicated region
    $region14: #{tpu_custom_call.1} parent=1 // pred_check
      _
    $region15: #{tpu_custom_call.1} parent=1 // pred_check_branch
      %18 = sbr.rel (0) target = $region17
    $region16: #{tpu_custom_call.1} parent=1 // pred_region
      _
    $region17: #{tpu_custom_call.1} parent=1 // pred_fallthru
      _
    // Predicated region
    $region18: #{tpu_custom_call.1} parent=1 // pred_check
      _
    $region19: #{tpu_custom_call.1} parent=1 // pred_check_branch
      %20 = sbr.rel (0) target = $region21
    $region20: #{tpu_custom_call.1} parent=1 // pred_region
      _
    $region21: #{tpu_custom_call.1} parent=1 // pred_fallthru
      _
    %v21 = vld [vmem:[%s0] sm:$0xf]
    %v22 = vld [vmem:[%s1] sm:$0xff]
    %v23 = vld [vmem:[%s1 + $0x8] sm:$0xff]
    %v24 = vld [vmem:[%s1 + $0x10] sm:$0xff]
    %v25 = vld [vmem:[%s1 + $0x18] sm:$0xff]
    %v26 = vld [vmem:[%s1 + $0x20] sm:$0xff]
    %v27 = vld [vmem:[%s1 + $0x28] sm:$0xff]
    %v28 = vld [vmem:[%s1 + $0x30] sm:$0xff]
    %v29 = vld [vmem:[%s1 + $0x38] sm:$0xff]
    %v30 = vld [vmem:[%s1 + $0x40] sm:$0xff]
    %v31 = vld [vmem:[%s1 + $0x48] sm:$0xff]
    %v32 = vld [vmem:[%s1 + $0x50] sm:$0xff]
    %v33 = vld [vmem:[%s1 + $0x58] sm:$0xff]
    %v34 = vld [vmem:[%s1 + $0x60] sm:$0xff]
    %v35 = vld [vmem:[%s1 + $0x68] sm:$0xff]
    %v36 = vld [vmem:[%s1 + $0x70] sm:$0xff]
    %v37 = vld [vmem:[%s1 + $0x78] sm:$0xff]
    %v38 = vld [vmem:[%s1 + $0x80] sm:$0xff]
    %v39 = vld [vmem:[%s1 + $0x88] sm:$0xff]
    %v40 = vld [vmem:[%s1 + $0x90] sm:$0xff]
    %v41 = vld [vmem:[%s1 + $0x98] sm:$0xff]
    %v42 = vld [vmem:[%s1 + $0xa0] sm:$0xff]
    %v43 = vld [vmem:[%s1 + $0xa8] sm:$0xff]
    %v44 = vld [vmem:[%s1 + $0xb0] sm:$0xff]
    %v45 = vld [vmem:[%s1 + $0xb8] sm:$0xff]
    %v46 = vld [vmem:[%s1 + $0xc0] sm:$0xff]
    %v47 = vld [vmem:[%s1 + $0xc8] sm:$0xff]
    %v48 = vld [vmem:[%s1 + $0xd0] sm:$0xff]
    %v49 = vld [vmem:[%s1 + $0xd8] sm:$0xff]
    %v50 = vld [vmem:[%s1 + $0xe0] sm:$0xff]
    %v51 = vld [vmem:[%s1 + $0xe8] sm:$0xff]
    %v52 = vld [vmem:[%s1 + $0xf0] sm:$0xff]
    %v53 = vld [vmem:[%s1 + $0xf8] sm:$0xff]
    %v54 = vld [vmem:[%s2] sm:$0x1]
    %v56 = vlaneseq
    %v57 = vshrl.u32 %v56, 7
    %v58 = vsub.s32 0, %v57
    %v59 = vrot.slane %v54, %v58
    %v63 = vunpack.c.l.s4 1983009808
    %v64 = vunpack.c.0.s8 %v63
    %v65 = vlaneseq
    %v66 = vshrl.u32 %v65, 7
    %v67 = vsub.s32 %v64, %v66
    %v68 = vrot.slane %v21, %v67
    %v69 = vcombine.high %v68, %v68
    %72 = vmatprep.subr.mxu0 0.0
    %73 = vmatpush1.msra.mxu0 %v37
    %74 = vmatprep.subr.mxu0 0.0
    %75 = vmatpush1.msra.mxu0 %v36
    %76 = vmatprep.subr.mxu0 0.0
    %77 = vmatpush1.msra.mxu0 %v35
    %78 = vmatprep.subr.mxu0 0.0
    %79 = vmatpush1.msra.mxu0 %v34
    %80 = vmatprep.subr.mxu0 0.0
    %81 = vmatpush1.msra.mxu0 %v33
    %82 = vmatprep.subr.mxu0 0.0
    %83 = vmatpush1.msra.mxu0 %v32
    %84 = vmatprep.subr.mxu0 0.0
    %85 = vmatpush1.msra.mxu0 %v31
    %86 = vmatprep.subr.mxu0 0.0
    %87 = vmatpush1.msra.mxu0 %v30
    %88 = vmatprep.subr.mxu0 0.0
    %89 = vmatpush1.msra.mxu0 %v29
    %90 = vmatprep.subr.mxu0 0.0
    %91 = vmatpush1.msra.mxu0 %v28
    %92 = vmatprep.subr.mxu0 0.0
    %93 = vmatpush1.msra.mxu0 %v27
    %94 = vmatprep.subr.mxu0 0.0
    %95 = vmatpush1.msra.mxu0 %v26
    %96 = vmatprep.subr.mxu0 0.0
    %97 = vmatpush1.msra.mxu0 %v25
    %98 = vmatprep.subr.mxu0 0.0
    %99 = vmatpush1.msra.mxu0 %v24
    %100 = vmatprep.subr.mxu0 0.0
    %101 = vmatpush1.msra.mxu0 %v23
    %102 = vmatprep.subr.mxu0 0.0
    %103 = vmatpush1.msra.mxu0 %v22
    %104 = vmatprep.subr.mxu0 0.0
    %105 = vmatpush2.msra.mxu0 %v53
    %106 = vmatprep.subr.mxu0 0.0
    %107 = vmatpush2.msra.mxu0 %v52
    %108 = vmatprep.subr.mxu0 0.0
    %109 = vmatpush2.msra.mxu0 %v51
    %110 = vmatprep.subr.mxu0 0.0
    %111 = vmatpush2.msra.mxu0 %v50
    %112 = vmatprep.subr.mxu0 0.0
    %113 = vmatpush2.msra.mxu0 %v49
    %114 = vmatprep.subr.mxu0 0.0
    %115 = vmatpush2.msra.mxu0 %v48
    %116 = vmatprep.subr.mxu0 0.0
    %117 = vmatpush2.msra.mxu0 %v47
    %118 = vmatprep.subr.mxu0 0.0
    %119 = vmatpush2.msra.mxu0 %v46
    %120 = vmatprep.subr.mxu0 0.0
    %121 = vmatpush2.msra.mxu0 %v45
    %122 = vmatprep.subr.mxu0 0.0
    %123 = vmatpush2.msra.mxu0 %v44
    %124 = vmatprep.subr.mxu0 0.0
    %125 = vmatpush2.msra.mxu0 %v43
    %126 = vmatprep.subr.mxu0 0.0
    %127 = vmatpush2.msra.mxu0 %v42
    %128 = vmatprep.subr.mxu0 0.0
    %129 = vmatpush2.msra.mxu0 %v41
    %130 = vmatprep.subr.mxu0 0.0
    %131 = vmatpush2.msra.mxu0 %v40
    %132 = vmatprep.subr.mxu0 0.0
    %133 = vmatpush2.msra.mxu0 %v39
    %134 = vmatprep.subr.mxu0 0.0
    %135 = vmatpush2.msra.mxu0 %v38
    %136 = vmatprep.mubr.f32.mxu0 %v69
    %137 = vmatmul.mubr.f32.gmra.mxu0 %v68
    %v138 = vpop.f32.mrf.mxu0
    %v139 = vadd.f32 %v59, %v138
    %v140 = vpop.f32.mrf.mxu0
    %141 = vdwg.mxu0
    %vm142 = vcmask 58368
    %v143 = vsel %vm142, %v139, -inf
    %144 = vmax.xlane.f32.xlu0 %v143
    %v145 = vpop.xlane.xlu0 %144
    %v146 = vsub.f32 %v139, %v145
    %v147 = vmul.f32 %v146, 1.442695
    %v148 = vpow.pop %v147
    %v149 = vsel %vm142, %v148, 0.0
    %150 = vadd.xlane.f32.xlu0 %v149
    %v151 = vpop.xlane.xlu0 %150
    %v152 = vrcp.pop %v151
    %v153 = vmul.f32 %v151, %v152
    %v154 = vsub.f32 2.0, %v153
    %v155 = vmul.f32 %v152, %v154
    %v156 = vmul.f32 %v148, %v155
    %v157 = vld [vmem:[%s3] sm:$0xff]
    %v158 = vld [vmem:[%s3 + $0x8] sm:$0xff]
    %vm159 = vcmask 64512
    %v161 = vsel %vm159, %v156, 0
    %163 = vmatprep.subr.mxu0 0.0
    %164 = vmatpush1.msra.mxu0 0.0
    %165 = vmatprep.subr.mxu0 0.0
    %166 = vmatpush1.msra.mxu0 0.0
    %167 = vmatprep.subr.mxu0 0.0
    %168 = vmatpush1.msra.mxu0 0.0
    %169 = vmatprep.subr.mxu0 0.0
    %170 = vmatpush1.msra.mxu0 0.0
    %171 = vmatprep.subr.mxu0 0.0
    %172 = vmatpush1.msra.mxu0 0.0
    %173 = vmatprep.subr.mxu0 0.0
    %174 = vmatpush1.msra.mxu0 0.0
    %175 = vmatprep.subr.mxu0 0.0
    %176 = vmatpush1.msra.mxu0 0.0
    %177 = vmatprep.subr.mxu0 0.0
    %178 = vmatpush1.msra.mxu0 0.0
    %179 = vmatprep.subr.mxu0 0.0
    %180 = vmatpush1.msra.mxu0 0.0
    %181 = vmatprep.subr.mxu0 0.0
    %182 = vmatpush1.msra.mxu0 0.0
    %183 = vmatprep.subr.mxu0 0.0
    %184 = vmatpush1.msra.mxu0 0.0
    %185 = vmatprep.subr.mxu0 0.0
    %186 = vmatpush1.msra.mxu0 0.0
    %187 = vmatprep.subr.mxu0 0.0
    %188 = vmatpush1.msra.mxu0 0.0
    %189 = vmatprep.subr.mxu0 0.0
    %190 = vmatpush1.msra.mxu0 0.0
    %191 = vmatprep.subr.mxu0 0.0
    %192 = vmatpush1.msra.mxu0 0.0
    %193 = vmatprep.subr.mxu0 %v158
    %194 = vmatpush1.msra.mxu0 %v157
    %195 = vmatprep.subr.mxu0 0.0
    %196 = vmatpush2.msra.mxu0 0.0
    %197 = vmatprep.subr.mxu0 0.0
    %198 = vmatpush2.msra.mxu0 0.0
    %199 = vmatprep.subr.mxu0 0.0
    %200 = vmatpush2.msra.mxu0 0.0
    %201 = vmatprep.subr.mxu0 0.0
    %202 = vmatpush2.msra.mxu0 0.0
    %203 = vmatprep.subr.mxu0 0.0
    %204 = vmatpush2.msra.mxu0 0.0
    %205 = vmatprep.subr.mxu0 0.0
    %206 = vmatpush2.msra.mxu0 0.0
    %207 = vmatprep.subr.mxu0 0.0
    %208 = vmatpush2.msra.mxu0 0.0
    %209 = vmatprep.subr.mxu0 0.0
    %210 = vmatpush2.msra.mxu0 0.0
    %211 = vmatprep.subr.mxu0 0.0
    %212 = vmatpush2.msra.mxu0 0.0
    %213 = vmatprep.subr.mxu0 0.0
    %214 = vmatpush2.msra.mxu0 0.0
    %215 = vmatprep.subr.mxu0 0.0
    %216 = vmatpush2.msra.mxu0 0.0
    %217 = vmatprep.subr.mxu0 0.0
    %218 = vmatpush2.msra.mxu0 0.0
    %219 = vmatprep.subr.mxu0 0.0
    %220 = vmatpush2.msra.mxu0 0.0
    %221 = vmatprep.subr.mxu0 0.0
    %222 = vmatpush2.msra.mxu0 0.0
    %223 = vmatprep.subr.mxu0 0.0
    %224 = vmatpush2.msra.mxu0 0.0
    %225 = vmatprep.subr.mxu0 0.0
    %226 = vmatpush2.msra.mxu0 0.0
    %227 = vmatprep.mubr.f32.mxu0 0.0
    %228 = vmatmul.mubr.f32.gmra.mxu0 %v161
    %v229 = vpop.f32.mrf.mxu0
    %v230 = vadd.f32 0.0, %v229
    %v231 = vpop.f32.mrf.mxu0
    %v232 = vadd.f32 0.0, %v231
    %233 = vdwg.mxu0
    %v234 = vmul.f32 %v230, %v68
    %v235 = vmul.f32 %v232, %v69
    %v236 = vld [vmem:[%s4] sm:$0xff]
    %v237 = vld [vmem:[%s4 + $0x8] sm:$0xff]
    %v238 = vld [vmem:[%s4 + $0x10] sm:$0xff]
    %v239 = vld [vmem:[%s4 + $0x18] sm:$0xff]
    %v240 = vld [vmem:[%s4 + $0x20] sm:$0xff]
    %v241 = vld [vmem:[%s4 + $0x28] sm:$0xff]
    %v242 = vld [vmem:[%s4 + $0x30] sm:$0xff]
    %v243 = vld [vmem:[%s4 + $0x38] sm:$0xff]
    %v244 = vld [vmem:[%s4 + $0x40] sm:$0xff]
    %v245 = vld [vmem:[%s4 + $0x48] sm:$0xff]
    %v246 = vld [vmem:[%s4 + $0x50] sm:$0xff]
    %v247 = vld [vmem:[%s4 + $0x58] sm:$0xff]
    %v248 = vld [vmem:[%s4 + $0x60] sm:$0xff]
    %v249 = vld [vmem:[%s4 + $0x68] sm:$0xff]
    %v250 = vld [vmem:[%s4 + $0x70] sm:$0xff]
    %v251 = vld [vmem:[%s4 + $0x78] sm:$0xff]
    %v252 = vld [vmem:[%s4 + $0x80] sm:$0xff]
    %v253 = vld [vmem:[%s4 + $0x88] sm:$0xff]
    %v254 = vld [vmem:[%s4 + $0x90] sm:$0xff]
    %v255 = vld [vmem:[%s4 + $0x98] sm:$0xff]
    %v256 = vld [vmem:[%s4 + $0xa0] sm:$0xff]
    %v257 = vld [vmem:[%s4 + $0xa8] sm:$0xff]
    %v258 = vld [vmem:[%s4 + $0xb0] sm:$0xff]
    %v259 = vld [vmem:[%s4 + $0xb8] sm:$0xff]
    %v260 = vld [vmem:[%s4 + $0xc0] sm:$0xff]
    %v261 = vld [vmem:[%s4 + $0xc8] sm:$0xff]
    %v262 = vld [vmem:[%s4 + $0xd0] sm:$0xff]
    %v263 = vld [vmem:[%s4 + $0xd8] sm:$0xff]
    %v264 = vld [vmem:[%s4 + $0xe0] sm:$0xff]
    %v265 = vld [vmem:[%s4 + $0xe8] sm:$0xff]
    %v266 = vld [vmem:[%s4 + $0xf0] sm:$0xff]
    %v267 = vld [vmem:[%s4 + $0xf8] sm:$0xff]
    %268 = vmatprep.subr.mxu0 0.0
    %269 = vmatpush1.msra.mxu0 %v251
    %270 = vmatprep.subr.mxu0 0.0
    %271 = vmatpush1.msra.mxu0 %v250
    %272 = vmatprep.subr.mxu0 0.0
    %273 = vmatpush1.msra.mxu0 %v249
    %274 = vmatprep.subr.mxu0 0.0
    %275 = vmatpush1.msra.mxu0 %v248
    %276 = vmatprep.subr.mxu0 0.0
    %277 = vmatpush1.msra.mxu0 %v247
    %278 = vmatprep.subr.mxu0 0.0
    %279 = vmatpush1.msra.mxu0 %v246
    %280 = vmatprep.subr.mxu0 0.0
    %281 = vmatpush1.msra.mxu0 %v245
    %282 = vmatprep.subr.mxu0 0.0
    %283 = vmatpush1.msra.mxu0 %v244
    %284 = vmatprep.subr.mxu0 0.0
    %285 = vmatpush1.msra.mxu0 %v243
    %286 = vmatprep.subr.mxu0 0.0
    %287 = vmatpush1.msra.mxu0 %v242
    %288 = vmatprep.subr.mxu0 0.0
    %289 = vmatpush1.msra.mxu0 %v241
    %290 = vmatprep.subr.mxu0 0.0
    %291 = vmatpush1.msra.mxu0 %v240
    %292 = vmatprep.subr.mxu0 0.0
    %293 = vmatpush1.msra.mxu0 %v239
    %294 = vmatprep.subr.mxu0 0.0
    %295 = vmatpush1.msra.mxu0 %v238
    %296 = vmatprep.subr.mxu0 0.0
    %297 = vmatpush1.msra.mxu0 %v237
    %298 = vmatprep.subr.mxu0 0.0
    %299 = vmatpush1.msra.mxu0 %v236
    %300 = vmatprep.subr.mxu0 0.0
    %301 = vmatpush2.msra.mxu0 %v267
    %302 = vmatprep.subr.mxu0 0.0
    %303 = vmatpush2.msra.mxu0 %v266
    %304 = vmatprep.subr.mxu0 0.0
    %305 = vmatpush2.msra.mxu0 %v265
    %306 = vmatprep.subr.mxu0 0.0
    %307 = vmatpush2.msra.mxu0 %v264
    %308 = vmatprep.subr.mxu0 0.0
    %309 = vmatpush2.msra.mxu0 %v263
    %310 = vmatprep.subr.mxu0 0.0
    %311 = vmatpush2.msra.mxu0 %v262
    %312 = vmatprep.subr.mxu0 0.0
    %313 = vmatpush2.msra.mxu0 %v261
    %314 = vmatprep.subr.mxu0 0.0
    %315 = vmatpush2.msra.mxu0 %v260
    %316 = vmatprep.subr.mxu0 0.0
    %317 = vmatpush2.msra.mxu0 %v259
    %318 = vmatprep.subr.mxu0 0.0
    %319 = vmatpush2.msra.mxu0 %v258
    %320 = vmatprep.subr.mxu0 0.0
    %321 = vmatpush2.msra.mxu0 %v257
    %322 = vmatprep.subr.mxu0 0.0
    %323 = vmatpush2.msra.mxu0 %v256
    %324 = vmatprep.subr.mxu0 0.0
    %325 = vmatpush2.msra.mxu0 %v255
    %326 = vmatprep.subr.mxu0 0.0
    %327 = vmatpush2.msra.mxu0 %v254
    %328 = vmatprep.subr.mxu0 0.0
    %329 = vmatpush2.msra.mxu0 %v253
    %330 = vmatprep.subr.mxu0 0.0
    %331 = vmatpush2.msra.mxu0 %v252
    %332 = vmatprep.mubr.f32.mxu0 %v235
    %333 = vmatmul.mubr.f32.gmra.mxu0 %v234
    %v334 = vpop.f32.mrf.mxu0
    %v335 = vadd.f32 0.0, %v334
    %v336 = vpop.f32.mrf.mxu0
    %337 = vdwg.mxu0
    %vm338 = vcmask 254976
    %339 = vst.msk [vmem:[#allocation2] sm:$0x3] %vm338, %v335
    // Predicated region
    $region22: #{tpu_custom_call.1} parent=1 // pred_check
      _
    $region23: #{tpu_custom_call.1} parent=1 // pred_check_branch
      %341 = sbr.rel (0) target = $region25
    $region24: #{tpu_custom_call.1} parent=1 // pred_region
      %s343 = ssub.s32 32, 32
      %344 = vsyncadd [#allocation3], %s343
      %s346 = sshll.u32 [#allocation2], 4
      %s347 = int_to_ptr.vmem [resolvable:$true] %s346
      %349 = dma.vmem_to_hbm [thread:$0]  %s347, 32, %s5, [#allocation3]
    $region25: #{tpu_custom_call.1} parent=1 // pred_fallthru
      _
    // Predicated region
    $region26: #{tpu_custom_call.1} parent=1 // pred_check
      _
    $region27: #{tpu_custom_call.1} parent=1 // pred_check_branch
      %351 = sbr.rel (0) target = $region29
    $region28: #{tpu_custom_call.1} parent=1 // pred_region
      %352 = dma.done [#allocation3], 32
    $region29: #{tpu_custom_call.1} parent=1 // pred_fallthru
      _
    %353 = vsyncpa [#allocation3], 1

</llo_original>
